<compile_context>
chip_gen: v5e
topology: v5e:2x2
jax: 0.10.0
libtpu: 0.0.40
codegen_flags: <defaults>
</compile_context>

<pallas_src>
import functools

import jax
import jax.numpy as jnp
from jax.experimental import pallas as pl
from jax.experimental.pallas import tpu as pltpu


def linear_sigmoid_kernel(x_ref, w_ref, b_ref, o_ref):
    # x_ref: (TB, F) VMEM, w_ref: (1, F) VMEM (lane-dense weight row),
    # b_ref: (1, 1) SMEM scalar, o_ref: (1, TB) VMEM (lane-dense output).
    prod = x_ref[...] * w_ref[...]                      # VPU multiply, w broadcast
    z = jnp.sum(prod, axis=-1) + b_ref[0, 0]            # XLU lane reduce + scalar add
    y = jax.nn.sigmoid(z)                               # EUP logistic
    o_ref[...] = y[None, :].astype(o_ref.dtype)         # (1, TB) lane-dense store


@functools.partial(jax.jit, static_argnames=("tb",))
def activated_resnet_forward(x, w, b, *, tb=512):
    """x: (B, F) f32, w: (F, 1) f32, b: (1, 1) f32 -> (B, 1) f32."""
    B, F = x.shape

    # Batch tile: multiple of 128 so the output row is lane-dense; clipped so a
    # small B still compiles as a single full block.  (2 * TB * F * 4B of x per
    # double-buffered tile stays far under the scoped VMEM limit for narrow F.)
    tb = max(128, min(tb, pl.cdiv(B, 128) * 128))
    b_pad = pl.cdiv(B, tb) * tb
    if b_pad != B:
        x = jnp.pad(x, ((0, b_pad - B), (0, 0)))
    num_tiles = b_pad // tb

    w_row = w.reshape(1, F)        # lane-dense weight row for VPU broadcast
    b_sc = b.reshape(1, 1)         # scalar bias -> SMEM

    out = pl.pallas_call(
        linear_sigmoid_kernel,
        out_shape=jax.ShapeDtypeStruct((num_tiles, tb), jnp.float32),
        grid=(num_tiles,),
        in_specs=[
            pl.BlockSpec((tb, F), lambda i: (i, 0)),
            pl.BlockSpec((1, F), lambda i: (0, 0)),
            pl.BlockSpec(memory_space=pltpu.MemorySpace.SMEM),
        ],
        out_specs=pl.BlockSpec((1, tb), lambda i: (i, 0)),
        compiler_params=pltpu.CompilerParams(
            dimension_semantics=("parallel",),
            vmem_limit_bytes=32 << 20,
        ),
        cost_estimate=pl.CostEstimate(
            flops=2 * b_pad * F,
            transcendentals=b_pad,
            bytes_accessed=4 * (b_pad * F + F + b_pad),
        ),
    )(x, w_row, b_sc)

    # Lane-dense (num_tiles, TB) slab back to the module's (B, 1) layout.
    return out.reshape(b_pad, 1)[:B]


if __name__ == "__main__":
    B, F = 8, 32  # small shapes: batch=8, in_features=32

    key = jax.random.PRNGKey(0)
    kx, kw, kb = jax.random.split(key, 3)

    # Deterministic init mirroring nn.Linear(in_features, 1):
    # uniform(-1/sqrt(F), 1/sqrt(F)) for weight and bias.
    bound = 1.0 / jnp.sqrt(jnp.float32(F))
    x = jax.random.normal(kx, (B, F), dtype=jnp.float32)
    w = jax.random.uniform(kw, (F, 1), dtype=jnp.float32, minval=-bound, maxval=bound)
    b = jax.random.uniform(kb, (1, 1), dtype=jnp.float32, minval=-bound, maxval=bound)

    out = activated_resnet_forward(x, w, b)
    out = jax.block_until_ready(out)

    # Reference (full-precision matmul so the check isn't dominated by XLA's
    # default bf16 matmul passes on TPU).
    z_ref = jnp.dot(x, w, precision=jax.lax.Precision.HIGHEST) + b
    ref = jax.nn.sigmoid(z_ref)

    assert out.shape == (B, 1)
    assert jnp.allclose(out, ref, atol=1e-5, rtol=1e-5)

    print("KERNEL_OK")
</pallas_src>

<mosaic_0001>
module attributes {stable_mosaic.version = 11 : i64} {
  func.func @linear_sigmoid_kernel(%arg0: i32, %arg1: memref<128x32xf32, #tpu.memory_space<vmem>>, %arg2: memref<1x32xf32, #tpu.memory_space<vmem>>, %arg3: memref<1x1xf32, #tpu.memory_space<smem>>, %arg4: memref<1x128xf32, #tpu.memory_space<vmem>>) attributes {dimension_semantics = [#tpu.dimension_semantics<parallel>], iteration_bounds = array<i64: 1>, scalar_prefetch = 0 : i64, scratch_operands = 0 : i64, tpu.core_type = #tpu.core_type<tc>, window_params = [{transform_indices = @transform_0, window_bounds = array<i64: 128, 32>}, {pipeline_mode = #tpu.pipeline_mode<synchronous>, transform_indices = @transform_1, window_bounds = array<i64: 1, 32>}, {transform_indices = @transform_2, window_bounds = array<i64: 1, 1>}, {transform_indices = @transform_3, window_bounds = array<i64: 1, 128>}]} {
    %c0 = arith.constant 0 : index
    %c0_0 = arith.constant 0 : index
    %0 = vector.load %arg1[%c0, %c0_0] : memref<128x32xf32, #tpu.memory_space<vmem>>, vector<128x32xf32>
    %c0_1 = arith.constant 0 : index
    %c0_2 = arith.constant 0 : index
    %1 = vector.load %arg2[%c0_1, %c0_2] : memref<1x32xf32, #tpu.memory_space<vmem>>, vector<1x32xf32>
    %2 = vector.broadcast %1 : vector<1x32xf32> to vector<128x32xf32>
    %3 = arith.mulf %0, %2 : vector<128x32xf32>
    %cst = arith.constant dense<0.000000e+00> : vector<128xf32>
    %4 = vector.multi_reduction <add>, %3, %cst [1] : vector<128x32xf32> to vector<128xf32>
    %c0_3 = arith.constant 0 : index
    %c0_4 = arith.constant 0 : index
    %5 = memref.load %arg3[%c0_3, %c0_4] : memref<1x1xf32, #tpu.memory_space<smem>>
    %6 = vector.broadcast %5 : f32 to vector<128xf32>
    %7 = arith.addf %4, %6 : vector<128xf32>
    %8 = arith.negf %7 : vector<128xf32>
    %9 = math.exp %8 : vector<128xf32>
    %cst_5 = arith.constant 1.000000e+00 : f32
    %10 = vector.broadcast %cst_5 : f32 to vector<128xf32>
    %11 = arith.addf %10, %9 : vector<128xf32>
    %12 = arith.divf %10, %11 : vector<128xf32>
    %13 = vector.shape_cast %12 : vector<128xf32> to vector<1x128xf32>
    %c0_6 = arith.constant 0 : index
    %c0_7 = arith.constant 0 : index
    %14 = vector.load %arg4[%c0_6, %c0_7] : memref<1x128xf32, #tpu.memory_space<vmem>>, vector<1x128xf32>
    tpu.vector_store %arg4[%c0_6, %c0_7], %13 {strides = array<i32>} : memref<1x128xf32, #tpu.memory_space<vmem>>, vector<1x128xf32>,
    return
  }
  func.func @transform_0(%arg0: i32) -> (i32, i32) {
    %c0_i32 = arith.constant 0 : i32
    %c0_i32_0 = arith.constant 0 : i32
    return %arg0, %c0_i32 : i32, i32
  }
  func.func @transform_1(%arg0: i32) -> (i32, i32) {
    %c0_i32 = arith.constant 0 : i32
    %c0_i32_0 = arith.constant 0 : i32
    %c0_i32_1 = arith.constant 0 : i32
    return %c0_i32, %c0_i32_0 : i32, i32
  }
  func.func @transform_2(%arg0: i32) -> (i32, i32) {
    %c0_i32 = arith.constant 0 : i32
    %c0_i32_0 = arith.constant 0 : i32
    %c0_i32_1 = arith.constant 0 : i32
    return %c0_i32, %c0_i32_0 : i32, i32
  }
  func.func @transform_3(%arg0: i32) -> (i32, i32) {
    %c0_i32 = arith.constant 0 : i32
    %c0_i32_0 = arith.constant 0 : i32
    return %arg0, %c0_i32 : i32, i32
  }
}

</mosaic_0001>

<llo_original>
// kernel: activated_resnet_forward.1
$region0: #{activated_resnet_forward.1}
  #allocation0 [shape = 'u32[]', space=smem, size = 0x4, offset = 0x4, fixed_abs, tag = 'smem constant byte address 0x4 - core index']
  #allocation1 [shape = 'u32[72,128]{1,0:T(1,128)}', space=vmem, size = 0x9000, scoped, tag = 'internal scratch']
  #allocation2 [shape = 'f32[1,1]{1,0:T(1,128)S(6)}', space=smem, size = 0x200, scoped, tag = 'scoped memory for activated_resnet_forward.1']
  %s0 = inlined_call_operand.vmem [shape: f32[128,32], index: 0, kind: input, shape index: {}]
  %s1 = inlined_call_operand.vmem [shape: f32[1,32], index: 1, kind: input, shape index: {}]
  %s2 = inlined_call_operand.<no memory space> [shape: f32[1,1], index: 2, kind: input, shape index: {}]
  %s3 = inlined_call_operand.vmem [shape: f32[1,128], index: 3, kind: output, shape index: {}]
  %s4 = sld [smem:[#allocation0]]
  $region22: #{activated_resnet_forward.1} parent=0
    _
  %s6 = ssub.s32 1, %s4
  %s7 = scalar_select 0, %s6, %s4
  %8 = sst [smem:[#allocation2]] %s2
  // Predicated region
  $region2: #{activated_resnet_forward.1} parent=0 // pred_check
    _
  $region3: #{activated_resnet_forward.1} parent=0 // pred_check_branch
    %10 = sbr.rel (0) target = $region5
  $region4: #{activated_resnet_forward.1} parent=0 // pred_region
    _
  $region5: #{activated_resnet_forward.1} parent=0 // pred_fallthru
    _
  // Predicated region
  $region6: #{activated_resnet_forward.1} parent=0 // pred_check
    _
  $region7: #{activated_resnet_forward.1} parent=0 // pred_check_branch
    %12 = sbr.rel (0) target = $region9
  $region8: #{activated_resnet_forward.1} parent=0 // pred_region
    _
  $region9: #{activated_resnet_forward.1} parent=0 // pred_fallthru
    _
  // Predicated region
  $region10: #{activated_resnet_forward.1} parent=0 // pred_check
    _
  $region11: #{activated_resnet_forward.1} parent=0 // pred_check_branch
    %14 = sbr.rel (0) target = $region13
  $region12: #{activated_resnet_forward.1} parent=0 // pred_region
    _
  $region13: #{activated_resnet_forward.1} parent=0 // pred_fallthru
    _
  %v15 = vld [vmem:[%s0] sm:$0xff]
  %v16 = vld [vmem:[%s0 + $0x8] sm:$0xff]
  %v17 = vld [vmem:[%s0 + $0x10] sm:$0xff]
  %v18 = vld [vmem:[%s0 + $0x18] sm:$0xff]
  %v19 = vld [vmem:[%s0 + $0x20] sm:$0xff]
  %v20 = vld [vmem:[%s0 + $0x28] sm:$0xff]
  %v21 = vld [vmem:[%s0 + $0x30] sm:$0xff]
  %v22 = vld [vmem:[%s0 + $0x38] sm:$0xff]
  %v23 = vld [vmem:[%s0 + $0x40] sm:$0xff]
  %v24 = vld [vmem:[%s0 + $0x48] sm:$0xff]
  %v25 = vld [vmem:[%s0 + $0x50] sm:$0xff]
  %v26 = vld [vmem:[%s0 + $0x58] sm:$0xff]
  %v27 = vld [vmem:[%s0 + $0x60] sm:$0xff]
  %v28 = vld [vmem:[%s0 + $0x68] sm:$0xff]
  %v29 = vld [vmem:[%s0 + $0x70] sm:$0xff]
  %v30 = vld [vmem:[%s0 + $0x78] sm:$0xff]
  %v31 = vld [vmem:[%s1] sm:$0x1]
  %v33 = vperm.slane %v31, 0
  %v35 = vmul.f32 %v15, %v33
  %v36 = vmul.f32 %v16, %v33
  %v37 = vmul.f32 %v17, %v33
  %v38 = vmul.f32 %v18, %v33
  %v39 = vmul.f32 %v19, %v33
  %v40 = vmul.f32 %v20, %v33
  %v41 = vmul.f32 %v21, %v33
  %v42 = vmul.f32 %v22, %v33
  %v43 = vmul.f32 %v23, %v33
  %v44 = vmul.f32 %v24, %v33
  %v45 = vmul.f32 %v25, %v33
  %v46 = vmul.f32 %v26, %v33
  %v47 = vmul.f32 %v27, %v33
  %v48 = vmul.f32 %v28, %v33
  %v49 = vmul.f32 %v29, %v33
  %v50 = vmul.f32 %v30, %v33
  %vm51 = vcmask 261120
  %v52 = vsel %vm51, %v35, 0.0
  %53 = vadd.xlane.f32.xlu0 %v52
  %v54 = vpop.xlane.xlu0 %53
  %v55 = vsel %vm51, %v36, 0.0
  %56 = vadd.xlane.f32.xlu0 %v55
  %v57 = vpop.xlane.xlu0 %56
  %v58 = vsel %vm51, %v37, 0.0
  %59 = vadd.xlane.f32.xlu0 %v58
  %v60 = vpop.xlane.xlu0 %59
  %v61 = vsel %vm51, %v38, 0.0
  %62 = vadd.xlane.f32.xlu0 %v61
  %v63 = vpop.xlane.xlu0 %62
  %v64 = vsel %vm51, %v39, 0.0
  %65 = vadd.xlane.f32.xlu0 %v64
  %v66 = vpop.xlane.xlu0 %65
  %v67 = vsel %vm51, %v40, 0.0
  %68 = vadd.xlane.f32.xlu0 %v67
  %v69 = vpop.xlane.xlu0 %68
  %v70 = vsel %vm51, %v41, 0.0
  %71 = vadd.xlane.f32.xlu0 %v70
  %v72 = vpop.xlane.xlu0 %71
  %v73 = vsel %vm51, %v42, 0.0
  %74 = vadd.xlane.f32.xlu0 %v73
  %v75 = vpop.xlane.xlu0 %74
  %v76 = vsel %vm51, %v43, 0.0
  %77 = vadd.xlane.f32.xlu0 %v76
  %v78 = vpop.xlane.xlu0 %77
  %v79 = vsel %vm51, %v44, 0.0
  %80 = vadd.xlane.f32.xlu0 %v79
  %v81 = vpop.xlane.xlu0 %80
  %v82 = vsel %vm51, %v45, 0.0
  %83 = vadd.xlane.f32.xlu0 %v82
  %v84 = vpop.xlane.xlu0 %83
  %v85 = vsel %vm51, %v46, 0.0
  %86 = vadd.xlane.f32.xlu0 %v85
  %v87 = vpop.xlane.xlu0 %86
  %v88 = vsel %vm51, %v47, 0.0
  %89 = vadd.xlane.f32.xlu0 %v88
  %v90 = vpop.xlane.xlu0 %89
  %v91 = vsel %vm51, %v48, 0.0
  %92 = vadd.xlane.f32.xlu0 %v91
  %v93 = vpop.xlane.xlu0 %92
  %v94 = vsel %vm51, %v49, 0.0
  %95 = vadd.xlane.f32.xlu0 %v94
  %v96 = vpop.xlane.xlu0 %95
  %v97 = vsel %vm51, %v50, 0.0
  %98 = vadd.xlane.f32.xlu0 %v97
  %v99 = vpop.xlane.xlu0 %98
  %s100 = sld [smem:[#allocation2]]
  %v101 = vstv %s100
  %v102 = vadd.f32 %v54, %v101
  %v103 = vadd.f32 %v57, %v101
  %v104 = vadd.f32 %v60, %v101
  %v105 = vadd.f32 %v63, %v101
  %v106 = vadd.f32 %v66, %v101
  %v107 = vadd.f32 %v69, %v101
  %v108 = vadd.f32 %v72, %v101
  %v109 = vadd.f32 %v75, %v101
  %v110 = vadd.f32 %v78, %v101
  %v111 = vadd.f32 %v81, %v101
  %v112 = vadd.f32 %v84, %v101
  %v113 = vadd.f32 %v87, %v101
  %v114 = vadd.f32 %v90, %v101
  %v115 = vadd.f32 %v93, %v101
  %v116 = vadd.f32 %v96, %v101
  %v117 = vadd.f32 %v99, %v101
  %v118 = vxor.u32 %v102, 2147483648
  %v119 = vxor.u32 %v103, 2147483648
  %v120 = vxor.u32 %v104, 2147483648
  %v121 = vxor.u32 %v105, 2147483648
  %v122 = vxor.u32 %v106, 2147483648
  %v123 = vxor.u32 %v107, 2147483648
  %v124 = vxor.u32 %v108, 2147483648
  %v125 = vxor.u32 %v109, 2147483648
  %v126 = vxor.u32 %v110, 2147483648
  %v127 = vxor.u32 %v111, 2147483648
  %v128 = vxor.u32 %v112, 2147483648
  %v129 = vxor.u32 %v113, 2147483648
  %v130 = vxor.u32 %v114, 2147483648
  %v131 = vxor.u32 %v115, 2147483648
  %v132 = vxor.u32 %v116, 2147483648
  %v133 = vxor.u32 %v117, 2147483648
  %v134 = vmul.f32 %v118, 1.442695
  %v135 = vpow.pop %v134
  %v136 = vmul.f32 %v119, 1.442695
  %v137 = vpow.pop %v136
  %v138 = vmul.f32 %v120, 1.442695
  %v139 = vpow.pop %v138
  %v140 = vmul.f32 %v121, 1.442695
  %v141 = vpow.pop %v140
  %v142 = vmul.f32 %v122, 1.442695
  %v143 = vpow.pop %v142
  %v144 = vmul.f32 %v123, 1.442695
  %v145 = vpow.pop %v144
  %v146 = vmul.f32 %v124, 1.442695
  %v147 = vpow.pop %v146
  %v148 = vmul.f32 %v125, 1.442695
  %v149 = vpow.pop %v148
  %v150 = vmul.f32 %v126, 1.442695
  %v151 = vpow.pop %v150
  %v152 = vmul.f32 %v127, 1.442695
  %v153 = vpow.pop %v152
  %v154 = vmul.f32 %v128, 1.442695
  %v155 = vpow.pop %v154
  %v156 = vmul.f32 %v129, 1.442695
  %v157 = vpow.pop %v156
  %v158 = vmul.f32 %v130, 1.442695
  %v159 = vpow.pop %v158
  %v160 = vmul.f32 %v131, 1.442695
  %v161 = vpow.pop %v160
  %v162 = vmul.f32 %v132, 1.442695
  %v163 = vpow.pop %v162
  %v164 = vmul.f32 %v133, 1.442695
  %v165 = vpow.pop %v164
  %v166 = vadd.f32 %v135, 1.0
  %v167 = vadd.f32 %v137, 1.0
  %v168 = vadd.f32 %v139, 1.0
  %v169 = vadd.f32 %v141, 1.0
  %v170 = vadd.f32 %v143, 1.0
  %v171 = vadd.f32 %v145, 1.0
  %v172 = vadd.f32 %v147, 1.0
  %v173 = vadd.f32 %v149, 1.0
  %v174 = vadd.f32 %v151, 1.0
  %v175 = vadd.f32 %v153, 1.0
  %v176 = vadd.f32 %v155, 1.0
  %v177 = vadd.f32 %v157, 1.0
  %v178 = vadd.f32 %v159, 1.0
  %v179 = vadd.f32 %v161, 1.0
  %v180 = vadd.f32 %v163, 1.0
  %v181 = vadd.f32 %v165, 1.0
  %v182 = vrcp.pop %v166
  %v183 = vmul.f32 %v166, %v182
  %v184 = vsub.f32 1.0, %v183
  %v185 = vmul.f32 %v182, %v184
  %v186 = vadd.f32 %v182, %v185
  %vm187 = vweird.f32 %v166
  %vm188 = vweird.f32 %v182
  %vm189 = vmor %vm187, %vm188
  %v190 = vsel %vm189, %v182, %v186
  %v191 = vand.u32 2147483647, %v166
  %vm192 = vcmp.eq.f32.partialorder %v191, 8.507059e+37
  %v193 = vand.u32 %v166, 2147483648
  %v194 = vor.u32 1.1754944e-38, %v193
  %v195 = vsel %vm192, %v194, %v190
  %v196 = vmul.f32 1.0, %v195
  %v197 = vrcp.pop %v167
  %v198 = vmul.f32 %v167, %v197
  %v199 = vsub.f32 1.0, %v198
  %v200 = vmul.f32 %v197, %v199
  %v201 = vadd.f32 %v197, %v200
  %vm202 = vweird.f32 %v167
  %vm203 = vweird.f32 %v197
  %vm204 = vmor %vm202, %vm203
  %v205 = vsel %vm204, %v197, %v201
  %v206 = vand.u32 2147483647, %v167
  %vm207 = vcmp.eq.f32.partialorder %v206, 8.507059e+37
  %v208 = vand.u32 %v167, 2147483648
  %v209 = vor.u32 1.1754944e-38, %v208
  %v210 = vsel %vm207, %v209, %v205
  %v211 = vmul.f32 1.0, %v210
  %v212 = vrcp.pop %v168
  %v213 = vmul.f32 %v168, %v212
  %v214 = vsub.f32 1.0, %v213
  %v215 = vmul.f32 %v212, %v214
  %v216 = vadd.f32 %v212, %v215
  %vm217 = vweird.f32 %v168
  %vm218 = vweird.f32 %v212
  %vm219 = vmor %vm217, %vm218
  %v220 = vsel %vm219, %v212, %v216
  %v221 = vand.u32 2147483647, %v168
  %vm222 = vcmp.eq.f32.partialorder %v221, 8.507059e+37
  %v223 = vand.u32 %v168, 2147483648
  %v224 = vor.u32 1.1754944e-38, %v223
  %v225 = vsel %vm222, %v224, %v220
  %v226 = vmul.f32 1.0, %v225
  %v227 = vrcp.pop %v169
  %v228 = vmul.f32 %v169, %v227
  %v229 = vsub.f32 1.0, %v228
  %v230 = vmul.f32 %v227, %v229
  %v231 = vadd.f32 %v227, %v230
  %vm232 = vweird.f32 %v169
  %vm233 = vweird.f32 %v227
  %vm234 = vmor %vm232, %vm233
  %v235 = vsel %vm234, %v227, %v231
  %v236 = vand.u32 2147483647, %v169
  %vm237 = vcmp.eq.f32.partialorder %v236, 8.507059e+37
  %v238 = vand.u32 %v169, 2147483648
  %v239 = vor.u32 1.1754944e-38, %v238
  %v240 = vsel %vm237, %v239, %v235
  %v241 = vmul.f32 1.0, %v240
  %v242 = vrcp.pop %v170
  %v243 = vmul.f32 %v170, %v242
  %v244 = vsub.f32 1.0, %v243
  %v245 = vmul.f32 %v242, %v244
  %v246 = vadd.f32 %v242, %v245
  %vm247 = vweird.f32 %v170
  %vm248 = vweird.f32 %v242
  %vm249 = vmor %vm247, %vm248
  %v250 = vsel %vm249, %v242, %v246
  %v251 = vand.u32 2147483647, %v170
  %vm252 = vcmp.eq.f32.partialorder %v251, 8.507059e+37
  %v253 = vand.u32 %v170, 2147483648
  %v254 = vor.u32 1.1754944e-38, %v253
  %v255 = vsel %vm252, %v254, %v250
  %v256 = vmul.f32 1.0, %v255
  %v257 = vrcp.pop %v171
  %v258 = vmul.f32 %v171, %v257
  %v259 = vsub.f32 1.0, %v258
  %v260 = vmul.f32 %v257, %v259
  %v261 = vadd.f32 %v257, %v260
  %vm262 = vweird.f32 %v171
  %vm263 = vweird.f32 %v257
  %vm264 = vmor %vm262, %vm263
  %v265 = vsel %vm264, %v257, %v261
  %v266 = vand.u32 2147483647, %v171
  %vm267 = vcmp.eq.f32.partialorder %v266, 8.507059e+37
  %v268 = vand.u32 %v171, 2147483648
  %v269 = vor.u32 1.1754944e-38, %v268
  %v270 = vsel %vm267, %v269, %v265
  %v271 = vmul.f32 1.0, %v270
  %v272 = vrcp.pop %v172
  %v273 = vmul.f32 %v172, %v272
  %v274 = vsub.f32 1.0, %v273
  %v275 = vmul.f32 %v272, %v274
  %v276 = vadd.f32 %v272, %v275
  %vm277 = vweird.f32 %v172
  %vm278 = vweird.f32 %v272
  %vm279 = vmor %vm277, %vm278
  %v280 = vsel %vm279, %v272, %v276
  %v281 = vand.u32 2147483647, %v172
  %vm282 = vcmp.eq.f32.partialorder %v281, 8.507059e+37
  %v283 = vand.u32 %v172, 2147483648
  %v284 = vor.u32 1.1754944e-38, %v283
  %v285 = vsel %vm282, %v284, %v280
  %v286 = vmul.f32 1.0, %v285
  %v287 = vrcp.pop %v173
  %v288 = vmul.f32 %v173, %v287
  %v289 = vsub.f32 1.0, %v288
  %v290 = vmul.f32 %v287, %v289
  %v291 = vadd.f32 %v287, %v290
  %vm292 = vweird.f32 %v173
  %vm293 = vweird.f32 %v287
  %vm294 = vmor %vm292, %vm293
  %v295 = vsel %vm294, %v287, %v291
  %v296 = vand.u32 2147483647, %v173
  %vm297 = vcmp.eq.f32.partialorder %v296, 8.507059e+37
  %v298 = vand.u32 %v173, 2147483648
  %v299 = vor.u32 1.1754944e-38, %v298
  %v300 = vsel %vm297, %v299, %v295
  %v301 = vmul.f32 1.0, %v300
  %v302 = vrcp.pop %v174
  %v303 = vmul.f32 %v174, %v302
  %v304 = vsub.f32 1.0, %v303
  %v305 = vmul.f32 %v302, %v304
  %v306 = vadd.f32 %v302, %v305
  %vm307 = vweird.f32 %v174
  %vm308 = vweird.f32 %v302
  %vm309 = vmor %vm307, %vm308
  %v310 = vsel %vm309, %v302, %v306
  %v311 = vand.u32 2147483647, %v174
  %vm312 = vcmp.eq.f32.partialorder %v311, 8.507059e+37
  %v313 = vand.u32 %v174, 2147483648
  %v314 = vor.u32 1.1754944e-38, %v313
  %v315 = vsel %vm312, %v314, %v310
  %v316 = vmul.f32 1.0, %v315
  %v317 = vrcp.pop %v175
  %v318 = vmul.f32 %v175, %v317
  %v319 = vsub.f32 1.0, %v318
  %v320 = vmul.f32 %v317, %v319
  %v321 = vadd.f32 %v317, %v320
  %vm322 = vweird.f32 %v175
  %vm323 = vweird.f32 %v317
  %vm324 = vmor %vm322, %vm323
  %v325 = vsel %vm324, %v317, %v321
  %v326 = vand.u32 2147483647, %v175
  %vm327 = vcmp.eq.f32.partialorder %v326, 8.507059e+37
  %v328 = vand.u32 %v175, 2147483648
  %v329 = vor.u32 1.1754944e-38, %v328
  %v330 = vsel %vm327, %v329, %v325
  %v331 = vmul.f32 1.0, %v330
  %v332 = vrcp.pop %v176
  %v333 = vmul.f32 %v176, %v332
  %v334 = vsub.f32 1.0, %v333
  %v335 = vmul.f32 %v332, %v334
  %v336 = vadd.f32 %v332, %v335
  %vm337 = vweird.f32 %v176
  %vm338 = vweird.f32 %v332
  %vm339 = vmor %vm337, %vm338
  %v340 = vsel %vm339, %v332, %v336
  %v341 = vand.u32 2147483647, %v176
  %vm342 = vcmp.eq.f32.partialorder %v341, 8.507059e+37
  %v343 = vand.u32 %v176, 2147483648
  %v344 = vor.u32 1.1754944e-38, %v343
  %v345 = vsel %vm342, %v344, %v340
  %v346 = vmul.f32 1.0, %v345
  %v347 = vrcp.pop %v177
  %v348 = vmul.f32 %v177, %v347
  %v349 = vsub.f32 1.0, %v348
  %v350 = vmul.f32 %v347, %v349
  %v351 = vadd.f32 %v347, %v350
  %vm352 = vweird.f32 %v177
  %vm353 = vweird.f32 %v347
  %vm354 = vmor %vm352, %vm353
  %v355 = vsel %vm354, %v347, %v351
  %v356 = vand.u32 2147483647, %v177
  %vm357 = vcmp.eq.f32.partialorder %v356, 8.507059e+37
  %v358 = vand.u32 %v177, 2147483648
  %v359 = vor.u32 1.1754944e-38, %v358
  %v360 = vsel %vm357, %v359, %v355
  %v361 = vmul.f32 1.0, %v360
  %v362 = vrcp.pop %v178
  %v363 = vmul.f32 %v178, %v362
  %v364 = vsub.f32 1.0, %v363
  %v365 = vmul.f32 %v362, %v364
  %v366 = vadd.f32 %v362, %v365
  %vm367 = vweird.f32 %v178
  %vm368 = vweird.f32 %v362
  %vm369 = vmor %vm367, %vm368
  %v370 = vsel %vm369, %v362, %v366
  %v371 = vand.u32 2147483647, %v178
  %vm372 = vcmp.eq.f32.partialorder %v371, 8.507059e+37
  %v373 = vand.u32 %v178, 2147483648
  %v374 = vor.u32 1.1754944e-38, %v373
  %v375 = vsel %vm372, %v374, %v370
  %v376 = vmul.f32 1.0, %v375
  %v377 = vrcp.pop %v179
  %v378 = vmul.f32 %v179, %v377
  %v379 = vsub.f32 1.0, %v378
  %v380 = vmul.f32 %v377, %v379
  %v381 = vadd.f32 %v377, %v380
  %vm382 = vweird.f32 %v179
  %vm383 = vweird.f32 %v377
  %vm384 = vmor %vm382, %vm383
  %v385 = vsel %vm384, %v377, %v381
  %v386 = vand.u32 2147483647, %v179
  %vm387 = vcmp.eq.f32.partialorder %v386, 8.507059e+37
  %v388 = vand.u32 %v179, 2147483648
  %v389 = vor.u32 1.1754944e-38, %v388
  %v390 = vsel %vm387, %v389, %v385
  %v391 = vmul.f32 1.0, %v390
  %v392 = vrcp.pop %v180
  %v393 = vmul.f32 %v180, %v392
  %v394 = vsub.f32 1.0, %v393
  %v395 = vmul.f32 %v392, %v394
  %v396 = vadd.f32 %v392, %v395
  %vm397 = vweird.f32 %v180
  %vm398 = vweird.f32 %v392
  %vm399 = vmor %vm397, %vm398
  %v400 = vsel %vm399, %v392, %v396
  %v401 = vand.u32 2147483647, %v180
  %vm402 = vcmp.eq.f32.partialorder %v401, 8.507059e+37
  %v403 = vand.u32 %v180, 2147483648
  %v404 = vor.u32 1.1754944e-38, %v403
  %v405 = vsel %vm402, %v404, %v400
  %v406 = vmul.f32 1.0, %v405
  %v407 = vrcp.pop %v181
  %v408 = vmul.f32 %v181, %v407
  %v409 = vsub.f32 1.0, %v408
  %v410 = vmul.f32 %v407, %v409
  %v411 = vadd.f32 %v407, %v410
  %vm412 = vweird.f32 %v181
  %vm413 = vweird.f32 %v407
  %vm414 = vmor %vm412, %vm413
  %v415 = vsel %vm414, %v407, %v411
  %v416 = vand.u32 2147483647, %v181
  %vm417 = vcmp.eq.f32.partialorder %v416, 8.507059e+37
  %v418 = vand.u32 %v181, 2147483648
  %v419 = vor.u32 1.1754944e-38, %v418
  %v420 = vsel %vm417, %v419, %v415
  %v421 = vmul.f32 1.0, %v420
  %v438 = vlaneseq
  %v439 = vand.u32 %v438, 127
  %v440 = vperm.slane %v196, %v439
  %v441 = vadd.s32 %v439, 4294967288
  %v442 = vperm.slane %v211, %v441
  %vm443 = vcmask 130112
  %v444 = vsel %vm443, %v442, %v440
  %v445 = vadd.s32 %v439, 4294967280
  %v446 = vperm.slane %v226, %v445
  %vm447 = vcmask 195712
  %v448 = vsel %vm447, %v446, %v444
  %v449 = vadd.s32 %v439, 4294967272
  %v450 = vperm.slane %v241, %v449
  %vm451 = vcmask 261312
  %v452 = vsel %vm451, %v450, %v448
  %v453 = vadd.s32 %v439, 4294967264
  %v454 = vperm.slane %v256, %v453
  %vm455 = vcmask 326912
  %v456 = vsel %vm455, %v454, %v452
  %v457 = vadd.s32 %v439, 4294967256
  %v458 = vperm.slane %v271, %v457
  %vm459 = vcmask 392512
  %v460 = vsel %vm459, %v458, %v456
  %v461 = vadd.s32 %v439, 4294967248
  %v462 = vperm.slane %v286, %v461
  %vm463 = vcmask 458112
  %v464 = vsel %vm463, %v462, %v460
  %v465 = vadd.s32 %v439, 4294967240
  %v466 = vperm.slane %v301, %v465
  %vm467 = vcmask 523712
  %v468 = vsel %vm467, %v466, %v464
  %v469 = vadd.s32 %v439, 4294967232
  %v470 = vperm.slane %v316, %v469
  %vm471 = vcmask 589312
  %v472 = vsel %vm471, %v470, %v468
  %v473 = vadd.s32 %v439, 4294967224
  %v474 = vperm.slane %v331, %v473
  %vm475 = vcmask 654912
  %v476 = vsel %vm475, %v474, %v472
  %v477 = vadd.s32 %v439, 4294967216
  %v478 = vperm.slane %v346, %v477
  %vm479 = vcmask 720512
  %v480 = vsel %vm479, %v478, %v476
  %v481 = vadd.s32 %v439, 4294967208
  %v482 = vperm.slane %v361, %v481
  %vm483 = vcmask 786112
  %v484 = vsel %vm483, %v482, %v480
  %v485 = vadd.s32 %v439, 4294967200
  %v486 = vperm.slane %v376, %v485
  %vm487 = vcmask 851712
  %v488 = vsel %vm487, %v486, %v484
  %v489 = vadd.s32 %v439, 4294967192
  %v490 = vperm.slane %v391, %v489
  %vm491 = vcmask 917312
  %v492 = vsel %vm491, %v490, %v488
  %v493 = vadd.s32 %v439, 4294967184
  %v494 = vperm.slane %v406, %v493
  %vm495 = vcmask 982912
  %v496 = vsel %vm495, %v494, %v492
  %v497 = vadd.s32 %v439, 4294967176
  %v498 = vperm.slane %v421, %v497
  %vm499 = vcmask 1048512
  %v500 = vsel %vm499, %v498, %v496
  %502 = vst [vmem:[%s3] sm:$0x1] %v500
  // Predicated region
  $region14: #{activated_resnet_forward.1} parent=0 // pred_check
    _
  $region15: #{activated_resnet_forward.1} parent=0 // pred_check_branch
    %504 = sbr.rel (0) target = $region17
  $region16: #{activated_resnet_forward.1} parent=0 // pred_region
    _
  $region17: #{activated_resnet_forward.1} parent=0 // pred_fallthru
    _
  // Predicated region
  $region18: #{activated_resnet_forward.1} parent=0 // pred_check
    _
  $region19: #{activated_resnet_forward.1} parent=0 // pred_check_branch
    %506 = sbr.rel (0) target = $region21
  $region20: #{activated_resnet_forward.1} parent=0 // pred_region
    _
  $region21: #{activated_resnet_forward.1} parent=0 // pred_fallthru
    _

</llo_original>
